<compile_context>
chip_gen: v5e
topology: v5e:2x2
jax: 0.10.0
libtpu: 0.0.40
codegen_flags: <defaults>
</compile_context>

<pallas_src>
import functools

import jax
import jax.numpy as jnp
from jax.experimental import pallas as pl
from jax.experimental.pallas import tpu as pltpu


def _round_up(x: int, m: int) -> int:
    return (x + m - 1) // m * m


def _tile_scores(i, j, y_ref, xt_ref, c_row_ref, c_col_ref, *,
                 apply_mask: bool, n_valid_cols):
    """Computes the (tm, tn) rough-score tile for grid point (i, j)."""
    tm = y_ref.shape[0]
    tn = xt_ref.shape[1]

    # Bilinear scores: [tm, d] @ [d, tn] -> [tm, tn], f32 accumulation on MXU.
    s = jnp.dot(y_ref[...], xt_ref[...], preferred_element_type=jnp.float32)
    # Character scores (row and column broadcasts), f32 epilogue.
    s = s + c_row_ref[...] + c_col_ref[...]

    col_ids = j * tn + jax.lax.broadcasted_iota(jnp.int32, (tm, tn), 1)
    if apply_mask:
        row_ids = i * tm + jax.lax.broadcasted_iota(jnp.int32, (tm, tn), 0)
        s = jnp.where(row_ids > col_ids, s, -jnp.inf)
    elif n_valid_cols is not None:
        # Only needed by the fused top-k path when score_succeeding=True and the
        # column axis is padded: padded columns must never win the top-k.
        s = jnp.where(col_ids < n_valid_cols, s, -jnp.inf)
    return s, col_ids


def _dense_kernel(y_ref, xt_ref, c_row_ref, c_col_ref, out_ref, *,
                  apply_mask: bool):
    """Writes one (tm, tn) tile of the full rough-score matrix."""
    i = pl.program_id(0)
    j = pl.program_id(1)
    tm, tn = out_ref.shape

    def compute():
        s, _ = _tile_scores(i, j, y_ref, xt_ref, c_row_ref, c_col_ref,
                            apply_mask=apply_mask, n_valid_cols=None)
        out_ref[...] = s.astype(out_ref.dtype)

    if apply_mask:
        # Every (row, col) in this tile has row <= col -> the tile is all -inf:
        # skip both the MXU matmul and the epilogue.
        fully_masked = (i * tm + (tm - 1)) <= (j * tn)

        @pl.when(fully_masked)
        def _():
            out_ref[...] = jnp.full((tm, tn), -jnp.inf, out_ref.dtype)

        @pl.when(jnp.logical_not(fully_masked))
        def _():
            compute()
    else:
        compute()


def _topk_kernel(y_ref, xt_ref, c_row_ref, c_col_ref, vals_ref, idxs_ref, *,
                 apply_mask: bool, n_valid_cols, k: int):
    """Fused per-row top-k: merges each (tm, tn) score tile into a running
    (tm, k) value/index state kept in the resident output blocks.

    The column grid axis must be sequential ("arbitrary"); the row axis stays
    "parallel".  Emits [n, k] instead of the [n, n] f32 matrix, removing the
    n^2 writeback + top_k re-read that dominate HBM traffic for prune=True.
    """
    i = pl.program_id(0)
    j = pl.program_id(1)
    tm = y_ref.shape[0]
    tn = xt_ref.shape[1]

    @pl.when(j == 0)
    def _():
        vals_ref[...] = jnp.full((tm, k), -jnp.inf, vals_ref.dtype)
        idxs_ref[...] = jax.lax.broadcasted_iota(jnp.int32, (tm, k), 1)

    def merge():
        s, col_ids = _tile_scores(i, j, y_ref, xt_ref, c_row_ref, c_col_ref,
                                  apply_mask=apply_mask,
                                  n_valid_cols=n_valid_cols)
        vals = vals_ref[...]          # [tm, k] current best values (sorted desc)
        idxs = idxs_ref[...]          # [tm, k] their column indices
        big = jnp.int32(jnp.iinfo(jnp.int32).max)
        # k is small & static -> fully unrolled; each step extracts the global
        # max across {previous top-k, current tile}, records it, and knocks the
        # selected (value, index) entry out of its source set.  Ties are broken
        # by the smallest column index, so only one entry is removed per step.
        for step in range(k):
            m = jnp.maximum(jnp.max(vals, axis=1, keepdims=True),
                            jnp.max(s, axis=1, keepdims=True))
            mi = jnp.minimum(
                jnp.min(jnp.where(vals == m, idxs, big), axis=1, keepdims=True),
                jnp.min(jnp.where(s == m, col_ids, big), axis=1, keepdims=True))
            vals_ref[:, step:step + 1] = m
            idxs_ref[:, step:step + 1] = mi
            vals = jnp.where((vals == m) & (idxs == mi), -jnp.inf, vals)
            s = jnp.where((s == m) & (col_ids == mi), -jnp.inf, s)
        # NOTE: rows with fewer than k unmasked candidates get -inf values with
        # arbitrary (possibly repeated) indices — same "arbitrary index for
        # -inf" behaviour as torch.topk on fully-masked rows.

    if apply_mask:
        fully_masked = (i * tm + (tm - 1)) <= (j * tn)

        @pl.when(jnp.logical_not(fully_masked))
        def _():
            merge()
    else:
        merge()


def coarse_scorer_forward(word_embeddings, w, b, character_scores=None,
                          topk=4, score_succeeding=False, prune=True,
                          tm=512, tn=256, compute_dtype=jnp.bfloat16,
                          max_fused_topk=16):
    """Pallas implementation of CoarseScorer.forward (eval mode).

    word_embeddings: [n, d]; w: [d, d] (nn.Linear weight, [out, in]); b: [d];
    character_scores: [n] or None.
    """
    n, d = word_embeddings.shape
    apply_mask = not score_succeeding

    x32 = word_embeddings.astype(jnp.float32)
    w32 = w.astype(jnp.float32)
    b32 = b.astype(jnp.float32)
    if character_scores is None:
        c32 = jnp.zeros((n,), jnp.float32)
    else:
        c32 = character_scores.astype(jnp.float32)

    # --- Linear projection hoisted to a single XLA matmul (review: frees VMEM,
    # removes the per-row-tile projection bubble, allows both axes "parallel").
    wt32 = w32.T
    if jnp.dtype(compute_dtype) == jnp.dtype(jnp.float32):
        y = jnp.dot(x32, wt32, precision=jax.lax.Precision.HIGHEST) + b32
    else:
        y = jnp.dot(x32.astype(compute_dtype), wt32.astype(compute_dtype),
                    preferred_element_type=jnp.float32) + b32
    y = y.astype(compute_dtype)
    x_c = x32.astype(compute_dtype)

    # --- Tile sizes: 256-multiples by default, clamped to the (128-rounded)
    # problem size.  Rows/columns are padded independently (no lcm blow-up).
    n128 = _round_up(max(n, 1), 128)
    tm = max(128, min(tm, n128))
    tn = max(128, min(tn, n128))
    n_rows = _round_up(n, tm)
    n_cols = _round_up(n, tn)

    y_p = jnp.pad(y, ((0, n_rows - n), (0, 0)))
    xt_p = jnp.pad(x_c, ((0, n_cols - n), (0, 0))).T          # [d, n_cols]
    c_row = jnp.pad(c32, (0, n_rows - n)).reshape(n_rows, 1)  # [n_rows, 1]
    c_col = jnp.pad(c32, (0, n_cols - n)).reshape(1, n_cols)  # [1, n_cols]

    grid = (n_rows // tm, n_cols // tn)
    in_specs = [
        pl.BlockSpec((tm, d), lambda i, j: (i, 0)),   # y row tile
        pl.BlockSpec((d, tn), lambda i, j: (0, j)),   # x^T column tile
        pl.BlockSpec((tm, 1), lambda i, j: (i, 0)),   # char scores (rows)
        pl.BlockSpec((1, tn), lambda i, j: (0, j)),   # char scores (cols)
    ]

    def dense_scores():
        kernel = functools.partial(_dense_kernel, apply_mask=apply_mask)
        scores = pl.pallas_call(
            kernel,
            out_shape=jax.ShapeDtypeStruct((n_rows, n_cols), jnp.float32),
            grid_spec=pltpu.PrefetchScalarGridSpec(
                num_scalar_prefetch=0, grid=grid,
                in_specs=in_specs,
                out_specs=pl.BlockSpec((tm, tn), lambda i, j: (i, j))),
            compiler_params=pltpu.CompilerParams(
                dimension_semantics=("parallel", "parallel")),
        )(y_p, xt_p, c_row, c_col)
        return scores[:n, :n]

    if not prune:
        return dense_scores()

    k = min(topk, n)
    if k > max_fused_topk:
        # Large k: the in-kernel merge would be VALU-bound; materialize + top_k.
        # TODO(synk): optionally emit bf16 scores here to halve the writeback.
        scores = dense_scores()
        top_scores, indices = jax.lax.top_k(scores, k)
        return top_scores, indices

    # --- Fused top-k path (small k): emit [n, k] directly.
    n_valid_cols = None if (apply_mask or n_cols == n) else n
    kernel = functools.partial(_topk_kernel, apply_mask=apply_mask,
                               n_valid_cols=n_valid_cols, k=k)
    top_scores, indices = pl.pallas_call(
        kernel,
        out_shape=(jax.ShapeDtypeStruct((n_rows, k), jnp.float32),
                   jax.ShapeDtypeStruct((n_rows, k), jnp.int32)),
        grid_spec=pltpu.PrefetchScalarGridSpec(
            num_scalar_prefetch=0, grid=grid,
            in_specs=in_specs,
            out_specs=(pl.BlockSpec((tm, k), lambda i, j: (i, 0)),
                       pl.BlockSpec((tm, k), lambda i, j: (i, 0)))),
        compiler_params=pltpu.CompilerParams(
            # Column axis must be sequential: the running top-k state lives in
            # the resident output blocks and is merged column-tile by tile.
            dimension_semantics=("parallel", "arbitrary")),
    )(y_p, xt_p, c_row, c_col)
    return top_scores[:n], indices[:n]


def _reference_scores(x, w, b, c, score_succeeding):
    """Pure-JAX f32 reference matching the PyTorch module (eval mode)."""
    y = x @ w.T + b
    s = y @ x.T
    if c is not None:
        s = s + c[:, None] + c[None, :]
    if not score_succeeding:
        ar = jnp.arange(x.shape[0])
        s = jnp.where(ar[:, None] > ar[None, :], s, -jnp.inf)
    return s


if __name__ == "__main__":
    def make_inputs(n, d, key):
        kx, kw, kb, kc = jax.random.split(key, 4)
        x = jax.random.normal(kx, (n, d), dtype=jnp.float32)
        w = jax.random.normal(kw, (d, d), dtype=jnp.float32) * 0.1
        b = jax.random.normal(kb, (d,), dtype=jnp.float32) * 0.1
        c = jax.random.normal(kc, (n,), dtype=jnp.float32)
        return x, w, b, c

    def max_finite_diff(a, ref):
        return float(jnp.max(jnp.abs(jnp.where(jnp.isfinite(ref), a - ref, 0.0))))

    key = jax.random.PRNGKey(0)
    n, d, topk = 16, 32, 4
    x, w, b, c = make_inputs(n, d, key)
    ref = _reference_scores(x, w, b, c, score_succeeding=False)

    # --- 1) dense path, f32 compute, tight numeric check ---------------------
    s32 = coarse_scorer_forward(x, w, b, c, topk=topk, prune=False,
                                compute_dtype=jnp.float32)
    jax.block_until_ready(s32)
    assert s32.shape == (n, n)
    assert bool(jnp.all(jnp.isfinite(s32) == jnp.isfinite(ref)))
    assert max_finite_diff(s32, ref) < 1e-3, "dense f32 mismatch"

    # --- 2) fused in-kernel top-k, f32, vs lax.top_k on the dense scores -----
    tv, ti = coarse_scorer_forward(x, w, b, c, topk=topk, prune=True,
                                   compute_dtype=jnp.float32)
    jax.block_until_ready((tv, ti))
    ref_tv, _ = jax.lax.top_k(s32, topk)
    assert tv.shape == (n, topk) and ti.shape == (n, topk)
    assert bool(jnp.all(jnp.isfinite(tv) == jnp.isfinite(ref_tv)))
    assert max_finite_diff(tv, ref_tv) < 1e-3, "fused top-k values mismatch"
    gathered = jnp.take_along_axis(s32, ti, axis=1)
    fin = jnp.isfinite(tv)
    assert float(jnp.max(jnp.abs(jnp.where(fin, gathered - tv, 0.0)))) < 1e-3

    # --- 3) default bf16 compute: dense (loose) + fused pruned path ----------
    sbf = coarse_scorer_forward(x, w, b, c, topk=topk, prune=False)
    tvb, tib = coarse_scorer_forward(x, w, b, c, topk=topk, prune=True)
    jax.block_until_ready((sbf, tvb, tib))
    assert bool(jnp.all(jnp.isfinite(sbf) == jnp.isfinite(ref)))
    assert max_finite_diff(sbf, ref) < 0.25, "dense bf16 mismatch"
    ref_tvb, _ = jax.lax.top_k(ref, topk)
    assert tvb.shape == (n, topk) and tib.shape == (n, topk)
    assert max_finite_diff(tvb, ref_tvb) < 0.3, "fused bf16 top-k mismatch"

    # --- 4) multi-tile (n=200, 128x128 tiles): padding + masked-tile skip ----
    n2 = 200
    x2, w2, b2, c2 = make_inputs(n2, d, jax.random.PRNGKey(1))
    ref2 = _reference_scores(x2, w2, b2, c2, score_succeeding=False)
    s2 = coarse_scorer_forward(x2, w2, b2, c2, topk=topk, prune=False,
                               compute_dtype=jnp.float32, tm=128, tn=128)
    jax.block_until_ready(s2)
    assert s2.shape == (n2, n2)
    assert bool(jnp.all(jnp.isfinite(s2) == jnp.isfinite(ref2)))
    assert max_finite_diff(s2, ref2) < 1e-3, "multi-tile dense mismatch"

    tv2, ti2 = coarse_scorer_forward(x2, w2, b2, c2, topk=topk, prune=True,
                                     compute_dtype=jnp.float32, tm=128, tn=128)
    jax.block_until_ready((tv2, ti2))
    ref_tv2, _ = jax.lax.top_k(s2, topk)
    assert bool(jnp.all(jnp.isfinite(tv2) == jnp.isfinite(ref_tv2)))
    assert max_finite_diff(tv2, ref_tv2) < 1e-3, "multi-tile fused top-k mismatch"
    gathered2 = jnp.take_along_axis(s2, ti2, axis=1)
    fin2 = jnp.isfinite(tv2)
    assert float(jnp.max(jnp.abs(jnp.where(fin2, gathered2 - tv2, 0.0)))) < 1e-3

    # --- 5) score_succeeding=True, unequal tiles, fused top-k with padded cols
    s2n = coarse_scorer_forward(x2, w2, b2, c2, topk=topk, score_succeeding=True,
                                prune=False, compute_dtype=jnp.float32,
                                tm=256, tn=128)
    tv3, ti3 = coarse_scorer_forward(x2, w2, b2, c2, topk=topk,
                                     score_succeeding=True, prune=True,
                                     compute_dtype=jnp.float32, tm=256, tn=128)
    jax.block_until_ready((s2n, tv3, ti3))
    ref2n = _reference_scores(x2, w2, b2, c2, score_succeeding=True)
    assert max_finite_diff(s2n, ref2n) < 1e-3, "no-mask dense mismatch"
    ref_tv3, _ = jax.lax.top_k(s2n, topk)
    assert max_finite_diff(tv3, ref_tv3) < 1e-3, "no-mask fused top-k mismatch"
    assert float(jnp.max(jnp.abs(jnp.take_along_axis(s2n, ti3, axis=1) - tv3))) < 1e-3

    # --- 6) large k -> dense + lax.top_k fallback -----------------------------
    tv4, ti4 = coarse_scorer_forward(x2, w2, b2, c2, topk=64, prune=True,
                                     compute_dtype=jnp.float32, tm=128, tn=128)
    jax.block_until_ready((tv4, ti4))
    assert tv4.shape == (n2, 64) and ti4.shape == (n2, 64)

    print("KERNEL_OK")
</pallas_src>

<mosaic_0001>
module attributes {stable_mosaic.version = 11 : i64} {
  func.func @_dense_kernel(%arg0: i32, %arg1: i32, %arg2: memref<128x32xf32, #tpu.memory_space<vmem>>, %arg3: memref<32x128xf32, #tpu.memory_space<vmem>>, %arg4: memref<128x1xf32, #tpu.memory_space<vmem>>, %arg5: memref<1x128xf32, #tpu.memory_space<vmem>>, %arg6: memref<128x128xf32, #tpu.memory_space<vmem>>) attributes {dimension_semantics = [#tpu.dimension_semantics<parallel>, #tpu.dimension_semantics<parallel>], iteration_bounds = array<i64: 1, 1>, scalar_prefetch = 0 : i64, scratch_operands = 0 : i64, tpu.core_type = #tpu.core_type<tc>, window_params = [{transform_indices = @transform_0, window_bounds = array<i64: 128, 32>}, {transform_indices = @transform_1, window_bounds = array<i64: 32, 128>}, {transform_indices = @transform_2, window_bounds = array<i64: 128, 1>}, {transform_indices = @transform_3, window_bounds = array<i64: 1, 128>}, {transform_indices = @transform_4, window_bounds = array<i64: 128, 128>}]} {
    %c128_i32 = arith.constant 128 : i32
    %0 = arith.muli %arg0, %c128_i32 : i32
    %c127_i32 = arith.constant 127 : i32
    %1 = arith.addi %0, %c127_i32 : i32
    %c128_i32_0 = arith.constant 128 : i32
    %2 = arith.muli %arg1, %c128_i32_0 : i32
    %3 = arith.cmpi sle, %1, %2 : i32
    %4 = arith.extui %3 : i1 to i32
    %c0_i32 = arith.constant 0 : i32
    %5 = arith.cmpi ne, %4, %c0_i32 : i32
    scf.if %5 {
      %cst = arith.constant 0xFF800000 : f32
      %9 = vector.broadcast %cst : f32 to vector<128x128xf32>
      %c0 = arith.constant 0 : index
      %c0_2 = arith.constant 0 : index
      %10 = vector.load %arg6[%c0, %c0_2] : memref<128x128xf32, #tpu.memory_space<vmem>>, vector<128x128xf32>
      tpu.vector_store %arg6[%c0, %c0_2], %9 {strides = array<i32>} : memref<128x128xf32, #tpu.memory_space<vmem>>, vector<128x128xf32>,
    } else {
    }
    %true = arith.constant true
    %6 = arith.xori %3, %true : i1
    %7 = arith.extui %6 : i1 to i32
    %c0_i32_1 = arith.constant 0 : i32
    %8 = arith.cmpi ne, %7, %c0_i32_1 : i32
    scf.if %8 {
      %c0 = arith.constant 0 : index
      %c0_2 = arith.constant 0 : index
      %9 = vector.load %arg2[%c0, %c0_2] : memref<128x32xf32, #tpu.memory_space<vmem>>, vector<128x32xf32>
      %c0_3 = arith.constant 0 : index
      %c0_4 = arith.constant 0 : index
      %10 = vector.load %arg3[%c0_3, %c0_4] : memref<32x128xf32, #tpu.memory_space<vmem>>, vector<32x128xf32>
      %cst = arith.constant dense<0.000000e+00> : vector<128x128xf32>
      %11 = tpu.matmul %9, %10, %cst {dimension_numbers = #tpu.dot_dimension_numbers<[1], [0], [0], [1], [0, 0, 1, 1], [], []>} : vector<128x32xf32>, vector<32x128xf32>, vector<128x128xf32> -> vector<128x128xf32>
      %c0_5 = arith.constant 0 : index
      %c0_6 = arith.constant 0 : index
      %12 = vector.load %arg4[%c0_5, %c0_6] : memref<128x1xf32, #tpu.memory_space<vmem>>, vector<128x1xf32>
      %13 = vector.broadcast %12 : vector<128x1xf32> to vector<128x128xf32>
      %14 = arith.addf %11, %13 : vector<128x128xf32>
      %c0_7 = arith.constant 0 : index
      %c0_8 = arith.constant 0 : index
      %15 = vector.load %arg5[%c0_7, %c0_8] : memref<1x128xf32, #tpu.memory_space<vmem>>, vector<1x128xf32>
      %16 = vector.broadcast %15 : vector<1x128xf32> to vector<128x128xf32>
      %17 = arith.addf %14, %16 : vector<128x128xf32>
      %c128_i32_9 = arith.constant 128 : i32
      %18 = arith.muli %arg1, %c128_i32_9 : i32
      %19 = tpu.iota {dimensions = array<i32: 1>} : vector<128x128xi32>
      %20 = vector.broadcast %18 : i32 to vector<128x128xi32>
      %21 = arith.addi %20, %19 : vector<128x128xi32>
      %c128_i32_10 = arith.constant 128 : i32
      %22 = arith.muli %arg0, %c128_i32_10 : i32
      %23 = tpu.iota {dimensions = array<i32: 0>} : vector<128x128xi32>
      %24 = vector.broadcast %22 : i32 to vector<128x128xi32>
      %25 = arith.addi %24, %23 : vector<128x128xi32>
      %26 = arith.cmpi sgt, %25, %21 : vector<128x128xi32>
      %cst_11 = arith.constant 0xFF800000 : f32
      %27 = vector.broadcast %cst_11 : f32 to vector<128x128xf32>
      %28 = arith.select %26, %17, %27 : vector<128x128xi1>, vector<128x128xf32>
      %c0_12 = arith.constant 0 : index
      %c0_13 = arith.constant 0 : index
      %29 = vector.load %arg6[%c0_12, %c0_13] : memref<128x128xf32, #tpu.memory_space<vmem>>, vector<128x128xf32>
      tpu.vector_store %arg6[%c0_12, %c0_13], %28 {strides = array<i32>} : memref<128x128xf32, #tpu.memory_space<vmem>>, vector<128x128xf32>,
    } else {
    }
    return
  }
  func.func @transform_0(%arg0: i32, %arg1: i32) -> (i32, i32) {
    %c0_i32 = arith.constant 0 : i32
    %c0_i32_0 = arith.constant 0 : i32
    return %arg0, %c0_i32 : i32, i32
  }
  func.func @transform_1(%arg0: i32, %arg1: i32) -> (i32, i32) {
    %c0_i32 = arith.constant 0 : i32
    %c0_i32_0 = arith.constant 0 : i32
    return %c0_i32, %arg1 : i32, i32
  }
  func.func @transform_2(%arg0: i32, %arg1: i32) -> (i32, i32) {
    %c0_i32 = arith.constant 0 : i32
    %c0_i32_0 = arith.constant 0 : i32
    return %arg0, %c0_i32 : i32, i32
  }
  func.func @transform_3(%arg0: i32, %arg1: i32) -> (i32, i32) {
    %c0_i32 = arith.constant 0 : i32
    %c0_i32_0 = arith.constant 0 : i32
    return %c0_i32, %arg1 : i32, i32
  }
  func.func @transform_4(%arg0: i32, %arg1: i32) -> (i32, i32) {
    %c0_i32 = arith.constant 0 : i32
    return %arg0, %arg1 : i32, i32
  }
}

</mosaic_0001>

<llo_original>
// kernel: tpu_custom_call.1
$region0: #{tpu_custom_call.1}
  #allocation0 [shape = 'u32[]', space=smem, size = 0x4, offset = 0x4, fixed_abs, tag = 'smem constant byte address 0x4 - core index']
  #allocation1 [shape = 'u32[72,128]{1,0:T(1,128)}', space=vmem, size = 0x9000, scoped, tag = 'internal scratch']
  %s0 = inlined_call_operand.vmem [shape: f32[128,32], index: 0, kind: input, shape index: {}]
  %s1 = inlined_call_operand.vmem [shape: f32[32,128], index: 1, kind: input, shape index: {}]
  %s2 = inlined_call_operand.vmem [shape: f32[128,1], index: 2, kind: input, shape index: {}]
  %s3 = inlined_call_operand.vmem [shape: f32[1,128], index: 3, kind: input, shape index: {}]
  %s4 = inlined_call_operand.hbm [shape: f32[128,128], index: 4, kind: output, shape index: {}]
  %s5 = sld [smem:[#allocation0]]
  $region34: #{tpu_custom_call.1} parent=0
    _
  %s7 = ssub.s32 1, %s5
  %s8 = scalar_select 0, %s7, %s5
  $region1: #{tpu_custom_call.1} parent=0
    #allocation2 [shape = 'u8[65536]{0}', space=vmem, size = 0x10000, scoped, tag = 'output window, operand 0, single buffered']
    #allocation3 [shape = 's32[1]{0}', space=sflag, size = 0x4, scoped, tag = 'scoped memory for tpu_custom_call.1']
    %9 = vsyncpa [#allocation3], 0
    // Predicated region
    $region2: #{tpu_custom_call.1} parent=1 // pred_check
      _
    $region3: #{tpu_custom_call.1} parent=1 // pred_check_branch
      %11 = sbr.rel (0) target = $region5
    $region4: #{tpu_custom_call.1} parent=1 // pred_region
      _
    $region5: #{tpu_custom_call.1} parent=1 // pred_fallthru
      _
    // Predicated region
    $region6: #{tpu_custom_call.1} parent=1 // pred_check
      _
    $region7: #{tpu_custom_call.1} parent=1 // pred_check_branch
      %13 = sbr.rel (0) target = $region9
    $region8: #{tpu_custom_call.1} parent=1 // pred_region
      _
    $region9: #{tpu_custom_call.1} parent=1 // pred_fallthru
      _
    // Predicated region
    $region10: #{tpu_custom_call.1} parent=1 // pred_check
      _
    $region11: #{tpu_custom_call.1} parent=1 // pred_check_branch
      %15 = sbr.rel (0) target = $region13
    $region12: #{tpu_custom_call.1} parent=1 // pred_region
      _
    $region13: #{tpu_custom_call.1} parent=1 // pred_fallthru
      _
    // Predicated region
    $region14: #{tpu_custom_call.1} parent=1 // pred_check
      _
    $region15: #{tpu_custom_call.1} parent=1 // pred_check_branch
      %17 = sbr.rel (0) target = $region17
    $region16: #{tpu_custom_call.1} parent=1 // pred_region
      _
    $region17: #{tpu_custom_call.1} parent=1 // pred_fallthru
      _
    %s18 = smul.u32 0, 128
    %s19 = sadd.s32 %s18, 127
    %s20 = smul.u32 0, 128
    %p21 = scmp.le.s32.totalorder %s19, %s20
    // Predicated region
    $region18: #{tpu_custom_call.1} parent=1 // pred_check
      %p22 = pneg %p21
    $region19: #{tpu_custom_call.1} parent=1 // pred_check_branch
      %24 = sbr.rel (%p22) target = $region21
    $region20: #{tpu_custom_call.1} parent=1 // pred_region
      %25 = vst [vmem:[#allocation2] sm:$0xff] -inf
      %26 = vst [vmem:[#allocation2 + $0x8] sm:$0xff] -inf
      %27 = vst [vmem:[#allocation2 + $0x10] sm:$0xff] -inf
      %28 = vst [vmem:[#allocation2 + $0x18] sm:$0xff] -inf
      %29 = vst [vmem:[#allocation2 + $0x20] sm:$0xff] -inf
      %30 = vst [vmem:[#allocation2 + $0x28] sm:$0xff] -inf
      %31 = vst [vmem:[#allocation2 + $0x30] sm:$0xff] -inf
      %32 = vst [vmem:[#allocation2 + $0x38] sm:$0xff] -inf
      %33 = vst [vmem:[#allocation2 + $0x40] sm:$0xff] -inf
      %34 = vst [vmem:[#allocation2 + $0x48] sm:$0xff] -inf
      %35 = vst [vmem:[#allocation2 + $0x50] sm:$0xff] -inf
      %36 = vst [vmem:[#allocation2 + $0x58] sm:$0xff] -inf
      %37 = vst [vmem:[#allocation2 + $0x60] sm:$0xff] -inf
      %38 = vst [vmem:[#allocation2 + $0x68] sm:$0xff] -inf
      %39 = vst [vmem:[#allocation2 + $0x70] sm:$0xff] -inf
      %40 = vst [vmem:[#allocation2 + $0x78] sm:$0xff] -inf
    $region21: #{tpu_custom_call.1} parent=1 // pred_fallthru
      _
    %p41 = scmp.gt.s32.totalorder %s19, %s20
    // Predicated region
    $region22: #{tpu_custom_call.1} parent=1 // pred_check
      %p42 = pneg %p41
    $region23: #{tpu_custom_call.1} parent=1 // pred_check_branch
      %44 = sbr.rel (%p42) target = $region25
    $region24: #{tpu_custom_call.1} parent=1 // pred_region
      %v45 = vld [vmem:[%s0] sm:$0xff]
      %v46 = vld [vmem:[%s0 + $0x8] sm:$0xff]
      %v47 = vld [vmem:[%s0 + $0x10] sm:$0xff]
      %v48 = vld [vmem:[%s0 + $0x18] sm:$0xff]
      %v49 = vld [vmem:[%s0 + $0x20] sm:$0xff]
      %v50 = vld [vmem:[%s0 + $0x28] sm:$0xff]
      %v51 = vld [vmem:[%s0 + $0x30] sm:$0xff]
      %v52 = vld [vmem:[%s0 + $0x38] sm:$0xff]
      %v53 = vld [vmem:[%s0 + $0x40] sm:$0xff]
      %v54 = vld [vmem:[%s0 + $0x48] sm:$0xff]
      %v55 = vld [vmem:[%s0 + $0x50] sm:$0xff]
      %v56 = vld [vmem:[%s0 + $0x58] sm:$0xff]
      %v57 = vld [vmem:[%s0 + $0x60] sm:$0xff]
      %v58 = vld [vmem:[%s0 + $0x68] sm:$0xff]
      %v59 = vld [vmem:[%s0 + $0x70] sm:$0xff]
      %v60 = vld [vmem:[%s0 + $0x78] sm:$0xff]
      %v61 = vld [vmem:[%s1] sm:$0xff]
      %v62 = vld [vmem:[%s1 + $0x8] sm:$0xff]
      %v63 = vld [vmem:[%s1 + $0x10] sm:$0xff]
      %v64 = vld [vmem:[%s1 + $0x18] sm:$0xff]
      %v65 = vld [vmem:[%s2] sm:$0xff]
      %v66 = vld [vmem:[%s2 + $0x8] sm:$0xff]
      %v67 = vld [vmem:[%s2 + $0x10] sm:$0xff]
      %v68 = vld [vmem:[%s2 + $0x18] sm:$0xff]
      %v69 = vld [vmem:[%s2 + $0x20] sm:$0xff]
      %v70 = vld [vmem:[%s2 + $0x28] sm:$0xff]
      %v71 = vld [vmem:[%s2 + $0x30] sm:$0xff]
      %v72 = vld [vmem:[%s2 + $0x38] sm:$0xff]
      %v73 = vld [vmem:[%s2 + $0x40] sm:$0xff]
      %v74 = vld [vmem:[%s2 + $0x48] sm:$0xff]
      %v75 = vld [vmem:[%s2 + $0x50] sm:$0xff]
      %v76 = vld [vmem:[%s2 + $0x58] sm:$0xff]
      %v77 = vld [vmem:[%s2 + $0x60] sm:$0xff]
      %v78 = vld [vmem:[%s2 + $0x68] sm:$0xff]
      %v79 = vld [vmem:[%s2 + $0x70] sm:$0xff]
      %v80 = vld [vmem:[%s2 + $0x78] sm:$0xff]
      %82 = vset.pattern.permute.xlu0 0
      %83 = vperm.xlu0 %82, %v65
      %v84 = vpop.permute.xlu0 %83
      %87 = vset.pattern.permute.xlu0 0
      %88 = vperm.xlu0 %87, %v66
      %v89 = vpop.permute.xlu0 %88
      %92 = vset.pattern.permute.xlu0 0
      %93 = vperm.xlu0 %92, %v67
      %v94 = vpop.permute.xlu0 %93
      %97 = vset.pattern.permute.xlu0 0
      %98 = vperm.xlu0 %97, %v68
      %v99 = vpop.permute.xlu0 %98
      %102 = vset.pattern.permute.xlu0 0
      %103 = vperm.xlu0 %102, %v69
      %v104 = vpop.permute.xlu0 %103
      %107 = vset.pattern.permute.xlu0 0
      %108 = vperm.xlu0 %107, %v70
      %v109 = vpop.permute.xlu0 %108
      %112 = vset.pattern.permute.xlu0 0
      %113 = vperm.xlu0 %112, %v71
      %v114 = vpop.permute.xlu0 %113
      %117 = vset.pattern.permute.xlu0 0
      %118 = vperm.xlu0 %117, %v72
      %v119 = vpop.permute.xlu0 %118
      %122 = vset.pattern.permute.xlu0 0
      %123 = vperm.xlu0 %122, %v73
      %v124 = vpop.permute.xlu0 %123
      %127 = vset.pattern.permute.xlu0 0
      %128 = vperm.xlu0 %127, %v74
      %v129 = vpop.permute.xlu0 %128
      %132 = vset.pattern.permute.xlu0 0
      %133 = vperm.xlu0 %132, %v75
      %v134 = vpop.permute.xlu0 %133
      %137 = vset.pattern.permute.xlu0 0
      %138 = vperm.xlu0 %137, %v76
      %v139 = vpop.permute.xlu0 %138
      %142 = vset.pattern.permute.xlu0 0
      %143 = vperm.xlu0 %142, %v77
      %v144 = vpop.permute.xlu0 %143
      %147 = vset.pattern.permute.xlu0 0
      %148 = vperm.xlu0 %147, %v78
      %v149 = vpop.permute.xlu0 %148
      %152 = vset.pattern.permute.xlu0 0
      %153 = vperm.xlu0 %152, %v79
      %v154 = vpop.permute.xlu0 %153
      %157 = vset.pattern.permute.xlu0 0
      %158 = vperm.xlu0 %157, %v80
      %v159 = vpop.permute.xlu0 %158
      %vm161 = vcmask 261120
      %v163 = vsel %vm161, %v45, 0
      %v166 = vsel %vm161, %v46, 0
      %v169 = vsel %vm161, %v47, 0
      %v172 = vsel %vm161, %v48, 0
      %v175 = vsel %vm161, %v49, 0
      %v178 = vsel %vm161, %v50, 0
      %v181 = vsel %vm161, %v51, 0
      %v184 = vsel %vm161, %v52, 0
      %v187 = vsel %vm161, %v53, 0
      %v190 = vsel %vm161, %v54, 0
      %v193 = vsel %vm161, %v55, 0
      %v196 = vsel %vm161, %v56, 0
      %v199 = vsel %vm161, %v57, 0
      %v202 = vsel %vm161, %v58, 0
      %v205 = vsel %vm161, %v59, 0
      %v208 = vsel %vm161, %v60, 0
      %210 = vmatpush.msra.mxu0 0.0
      %211 = vmatpush.msra.mxu0 0.0
      %212 = vmatpush.msra.mxu0 0.0
      %213 = vmatpush.msra.mxu0 0.0
      %214 = vmatpush.msra.mxu0 0.0
      %215 = vmatpush.msra.mxu0 0.0
      %216 = vmatpush.msra.mxu0 0.0
      %217 = vmatpush.msra.mxu0 0.0
      %218 = vmatpush.msra.mxu0 0.0
      %219 = vmatpush.msra.mxu0 0.0
      %220 = vmatpush.msra.mxu0 0.0
      %221 = vmatpush.msra.mxu0 0.0
      %222 = vmatpush.msra.mxu0 %v64
      %223 = vmatpush.msra.mxu0 %v63
      %224 = vmatpush.msra.mxu0 %v62
      %225 = vmatpush.msra.mxu0 %v61
      %226 = vmatmul.f32.gmra.mxu0 %v163
      %v227 = vpop.f32.mrf.mxu0
      %v228 = vadd.f32 %v84, %v227
      %229 = vmatmul.f32.gmra.mxu0 %v166
      %v230 = vpop.f32.mrf.mxu0
      %v231 = vadd.f32 %v89, %v230
      %232 = vmatmul.f32.gmra.mxu0 %v169
      %v233 = vpop.f32.mrf.mxu0
      %v234 = vadd.f32 %v94, %v233
      %235 = vmatmul.f32.gmra.mxu0 %v172
      %v236 = vpop.f32.mrf.mxu0
      %v237 = vadd.f32 %v99, %v236
      %238 = vmatmul.f32.gmra.mxu0 %v175
      %v239 = vpop.f32.mrf.mxu0
      %v240 = vadd.f32 %v104, %v239
      %241 = vmatmul.f32.gmra.mxu0 %v178
      %v242 = vpop.f32.mrf.mxu0
      %v243 = vadd.f32 %v109, %v242
      %244 = vmatmul.f32.gmra.mxu0 %v181
      %v245 = vpop.f32.mrf.mxu0
      %v246 = vadd.f32 %v114, %v245
      %247 = vmatmul.f32.gmra.mxu0 %v184
      %v248 = vpop.f32.mrf.mxu0
      %v249 = vadd.f32 %v119, %v248
      %250 = vmatmul.f32.gmra.mxu0 %v187
      %v251 = vpop.f32.mrf.mxu0
      %v252 = vadd.f32 %v124, %v251
      %253 = vmatmul.f32.gmra.mxu0 %v190
      %v254 = vpop.f32.mrf.mxu0
      %v255 = vadd.f32 %v129, %v254
      %256 = vmatmul.f32.gmra.mxu0 %v193
      %v257 = vpop.f32.mrf.mxu0
      %v258 = vadd.f32 %v134, %v257
      %259 = vmatmul.f32.gmra.mxu0 %v196
      %v260 = vpop.f32.mrf.mxu0
      %v261 = vadd.f32 %v139, %v260
      %262 = vmatmul.f32.gmra.mxu0 %v199
      %v263 = vpop.f32.mrf.mxu0
      %v264 = vadd.f32 %v144, %v263
      %265 = vmatmul.f32.gmra.mxu0 %v202
      %v266 = vpop.f32.mrf.mxu0
      %v267 = vadd.f32 %v149, %v266
      %268 = vmatmul.f32.gmra.mxu0 %v205
      %v269 = vpop.f32.mrf.mxu0
      %v270 = vadd.f32 %v154, %v269
      %271 = vmatmul.f32.gmra.mxu0 %v208
      %v272 = vpop.f32.mrf.mxu0
      %v273 = vadd.f32 %v159, %v272
      %274 = vdwg.mxu0
      %v275 = vld [vmem:[%s3] sm:$0x1]
      %v277 = vperm.slane %v275, 0
      %v279 = vadd.f32 %v228, %v277
      %v280 = vadd.f32 %v231, %v277
      %v281 = vadd.f32 %v234, %v277
      %v282 = vadd.f32 %v237, %v277
      %v283 = vadd.f32 %v240, %v277
      %v284 = vadd.f32 %v243, %v277
      %v285 = vadd.f32 %v246, %v277
      %v286 = vadd.f32 %v249, %v277
      %v287 = vadd.f32 %v252, %v277
      %v288 = vadd.f32 %v255, %v277
      %v289 = vadd.f32 %v258, %v277
      %v290 = vadd.f32 %v261, %v277
      %v291 = vadd.f32 %v264, %v277
      %v292 = vadd.f32 %v267, %v277
      %v293 = vadd.f32 %v270, %v277
      %v294 = vadd.f32 %v273, %v277
      %v295 = vlaneseq
      %v296 = vand.u32 %v295, 127
      %v297 = vstv %s20
      %v298 = vadd.s32 %v297, %v296
      %v299 = vlaneseq
      %v300 = vshrl.u32 %v299, 7
      %v301 = vadd.s32 %v300, 8
      %v302 = vadd.s32 %v300, 16
      %v303 = vadd.s32 %v300, 24
      %v304 = vadd.s32 %v300, 32
      %v305 = vadd.s32 %v300, 40
      %v306 = vadd.s32 %v300, 48
      %v307 = vadd.s32 %v300, 56
      %v308 = vadd.s32 %v300, 64
      %v309 = vadd.s32 %v300, 72
      %v310 = vadd.s32 %v300, 80
      %v311 = vadd.s32 %v300, 88
      %v312 = vadd.s32 %v300, 96
      %v313 = vadd.s32 %v300, 104
      %v314 = vadd.s32 %v300, 112
      %v315 = vadd.s32 %v300, 120
      %v316 = vstv %s18
      %v317 = vadd.s32 %v316, %v300
      %v318 = vadd.s32 %v316, %v301
      %v319 = vadd.s32 %v316, %v302
      %v320 = vadd.s32 %v316, %v303
      %v321 = vadd.s32 %v316, %v304
      %v322 = vadd.s32 %v316, %v305
      %v323 = vadd.s32 %v316, %v306
      %v324 = vadd.s32 %v316, %v307
      %v325 = vadd.s32 %v316, %v308
      %v326 = vadd.s32 %v316, %v309
      %v327 = vadd.s32 %v316, %v310
      %v328 = vadd.s32 %v316, %v311
      %v329 = vadd.s32 %v316, %v312
      %v330 = vadd.s32 %v316, %v313
      %v331 = vadd.s32 %v316, %v314
      %v332 = vadd.s32 %v316, %v315
      %vm333 = vcmp.gt.s32.totalorder %v317, %v298
      %vm334 = vcmp.gt.s32.totalorder %v318, %v298
      %vm335 = vcmp.gt.s32.totalorder %v319, %v298
      %vm336 = vcmp.gt.s32.totalorder %v320, %v298
      %vm337 = vcmp.gt.s32.totalorder %v321, %v298
      %vm338 = vcmp.gt.s32.totalorder %v322, %v298
      %vm339 = vcmp.gt.s32.totalorder %v323, %v298
      %vm340 = vcmp.gt.s32.totalorder %v324, %v298
      %vm341 = vcmp.gt.s32.totalorder %v325, %v298
      %vm342 = vcmp.gt.s32.totalorder %v326, %v298
      %vm343 = vcmp.gt.s32.totalorder %v327, %v298
      %vm344 = vcmp.gt.s32.totalorder %v328, %v298
      %vm345 = vcmp.gt.s32.totalorder %v329, %v298
      %vm346 = vcmp.gt.s32.totalorder %v330, %v298
      %vm347 = vcmp.gt.s32.totalorder %v331, %v298
      %vm348 = vcmp.gt.s32.totalorder %v332, %v298
      %v349 = vsel %vm333, %v279, -inf
      %v350 = vsel %vm334, %v280, -inf
      %v351 = vsel %vm335, %v281, -inf
      %v352 = vsel %vm336, %v282, -inf
      %v353 = vsel %vm337, %v283, -inf
      %v354 = vsel %vm338, %v284, -inf
      %v355 = vsel %vm339, %v285, -inf
      %v356 = vsel %vm340, %v286, -inf
      %v357 = vsel %vm341, %v287, -inf
      %v358 = vsel %vm342, %v288, -inf
      %v359 = vsel %vm343, %v289, -inf
      %v360 = vsel %vm344, %v290, -inf
      %v361 = vsel %vm345, %v291, -inf
      %v362 = vsel %vm346, %v292, -inf
      %v363 = vsel %vm347, %v293, -inf
      %v364 = vsel %vm348, %v294, -inf
      %365 = vst [vmem:[#allocation2] sm:$0xff] %v349
      %366 = vst [vmem:[#allocation2 + $0x8] sm:$0xff] %v350
      %367 = vst [vmem:[#allocation2 + $0x10] sm:$0xff] %v351
      %368 = vst [vmem:[#allocation2 + $0x18] sm:$0xff] %v352
      %369 = vst [vmem:[#allocation2 + $0x20] sm:$0xff] %v353
      %370 = vst [vmem:[#allocation2 + $0x28] sm:$0xff] %v354
      %371 = vst [vmem:[#allocation2 + $0x30] sm:$0xff] %v355
      %372 = vst [vmem:[#allocation2 + $0x38] sm:$0xff] %v356
      %373 = vst [vmem:[#allocation2 + $0x40] sm:$0xff] %v357
      %374 = vst [vmem:[#allocation2 + $0x48] sm:$0xff] %v358
      %375 = vst [vmem:[#allocation2 + $0x50] sm:$0xff] %v359
      %376 = vst [vmem:[#allocation2 + $0x58] sm:$0xff] %v360
      %377 = vst [vmem:[#allocation2 + $0x60] sm:$0xff] %v361
      %378 = vst [vmem:[#allocation2 + $0x68] sm:$0xff] %v362
      %379 = vst [vmem:[#allocation2 + $0x70] sm:$0xff] %v363
      %380 = vst [vmem:[#allocation2 + $0x78] sm:$0xff] %v364
    $region25: #{tpu_custom_call.1} parent=1 // pred_fallthru
      _
    // Predicated region
    $region26: #{tpu_custom_call.1} parent=1 // pred_check
      _
    $region27: #{tpu_custom_call.1} parent=1 // pred_check_branch
      %382 = sbr.rel (0) target = $region29
    $region28: #{tpu_custom_call.1} parent=1 // pred_region
      %384 = vsyncadd [#allocation3], 0
      %s385 = sshll.u32 [#allocation2], 4
      %s386 = int_to_ptr.vmem [resolvable:$true] %s385
      %s387 = sshll.u32 %s4, 4
      %s388 = int_to_ptr.hbm [resolvable:$true] %s387
      %393 = dma.vmem_to_hbm [thread:$0]  %s386, 2048, %s388, [#allocation3], 128, 128, 8
    $region29: #{tpu_custom_call.1} parent=1 // pred_fallthru
      _
    // Predicated region
    $region30: #{tpu_custom_call.1} parent=1 // pred_check
      _
    $region31: #{tpu_custom_call.1} parent=1 // pred_check_branch
      %395 = sbr.rel (0) target = $region33
    $region32: #{tpu_custom_call.1} parent=1 // pred_region
      %397 = dma.done [#allocation3], 2048
    $region33: #{tpu_custom_call.1} parent=1 // pred_fallthru
      _
    %398 = vsyncpa [#allocation3], 1

</llo_original>
